<compile_context>
chip_gen: v6e
topology: v6e:2x2x1
jax: 0.10.0
libtpu: 0.0.40
codegen_flags: <defaults>
</compile_context>

<pallas_src>
import functools

import jax
import jax.numpy as jnp
import numpy as np
from jax.experimental import pallas as pl
from jax.experimental.pallas import tpu as pltpu

EPS = 1e-5
MATMUL_DTYPE = jnp.bfloat16   # operands of the HBM-fed fused matmul (f32 accumulate)


def block_kernel(xp1_ref, wc_ref, bc_ref, g1_ref, be1_ref,
                 w2_ref, b2_ref, g2_ref, be2_ref, out_ref,
                 *, n, lout, cp):
    f32 = jnp.float32
    m = n * lout
    inv_m = 1.0 / float(m)

    # ---- fused conv1 (k=3, s=2, p=1) + identity (k=1, s=2): one MXU matmul ----
    hi = jnp.dot(xp1_ref[...], wc_ref[...], preferred_element_type=f32)
    hi = hi + bc_ref[...]
    h = hi[:, :cp]            # conv1 pre-BN        (M, CP)
    ident = hi[:, cp:]        # identity branch     (M, CP)

    # ---- BatchNorm1d #1: one reduction pass over lane-concatenated [h | h*h] ----
    s = jnp.sum(jnp.concatenate([h, h * h], axis=1), axis=0, keepdims=True)
    mu1 = s[:, :cp] * inv_m
    var1 = s[:, cp:] * inv_m - mu1 * mu1
    h = (h - mu1) * (jax.lax.rsqrt(var1 + EPS) * g1_ref[...]) + be1_ref[...]
    h = jnp.maximum(h, 0.0)   # ReLU

    # ---- conv2 (k=3, s=1, p=1): shifted taps, lane-concat, single matmul ----
    # (Sublane shift via zero-row concat; lout is the sequence axis, so the zero
    #  row correctly decouples neighbouring samples in the flattened M = N*Lout.)
    h3 = h.reshape(n, lout, cp)
    zrow = jnp.zeros((n, 1, cp), f32)
    t_prev = jnp.concatenate([zrow, h3[:, :lout - 1, :]], axis=1)   # h[l-1], 0 at l=0
    t_next = jnp.concatenate([h3[:, 1:, :], zrow], axis=1)          # h[l+1], 0 at l=L-1
    hcat = jnp.concatenate([t_prev, h3, t_next], axis=2).reshape(m, 3 * cp)
    o = jnp.dot(hcat, w2_ref[...], preferred_element_type=f32) + b2_ref[...]

    # ---- BatchNorm1d #2 (same one-pass stats) ----
    s2 = jnp.sum(jnp.concatenate([o, o * o], axis=1), axis=0, keepdims=True)
    mu2 = s2[:, :cp] * inv_m
    var2 = s2[:, cp:] * inv_m - mu2 * mu2
    o = (o - mu2) * (jax.lax.rsqrt(var2 + EPS) * g2_ref[...]) + be2_ref[...]

    # ---- residual add + final ReLU; CP is a multiple of 128 -> dense stores ----
    out_ref[...] = jnp.maximum(o + ident, 0.0)


@jax.jit
def block_forward(x, params):
    """x: (N, Cin, L) float32 in PyTorch NCW layout. Returns (N, Cout, Lout)."""
    wm, bm, w1, b1, g1, be1, w2, b2, g2, be2 = params
    N, Cin, L = x.shape
    Cout = wm.shape[0]
    Lout = (L - 1) // 2 + 1      # identical for the k=1/s=2 and k=3/s=2/p=1 convs
    CP = ((Cout + 127) // 128) * 128     # lane-dense padded channel count
    M = N * Lout

    # --- glue: im2col patches for the fused stride-2 conv (channel-major, tap-minor) ---
    xpad = jnp.pad(x, ((0, 0), (0, 0), (1, 1)))
    idx = 2 * jnp.arange(Lout)[:, None] + jnp.arange(3)[None, :]     # (Lout, 3)
    patches = xpad[:, :, idx]                                        # (N, Cin, Lout, 3)
    xp1 = patches.transpose(0, 2, 1, 3).reshape(M, Cin * 3)

    def pad_c(v):  # zero-pad trailing (channel) axis Cout -> CP
        return jnp.pad(v, [(0, 0)] * (v.ndim - 1) + [(0, CP - Cout)])

    # --- fused weight: [conv1 | identity-at-centre-tap], channels padded to CP ---
    w1_m = pad_c(w1.reshape(Cout, Cin * 3).T)                        # (Cin*3, CP)
    w_id = jnp.zeros((Cin, 3, CP), jnp.float32).at[:, 1, :Cout].set(wm[:, :, 0].T)
    w_id = w_id.reshape(Cin * 3, CP)                                 # (Cin*3, CP)
    w_comb = jnp.concatenate([w1_m, w_id], axis=1)                   # (Cin*3, 2*CP)
    b_comb = jnp.concatenate([pad_c(b1), pad_c(bm)]).reshape(1, 2 * CP).astype(jnp.float32)

    # --- conv2 weight in [tap-block-row, out-channel-lane] layout, padded ---
    w2p = jnp.pad(w2, ((0, CP - Cout), (0, CP - Cout), (0, 0)))      # (CP, CP, 3)
    w2_m = jnp.concatenate([w2p[:, :, k].T for k in range(3)], axis=0)  # (3*CP, CP)

    row = lambda v: pad_c(v).reshape(1, CP).astype(jnp.float32)

    kernel = functools.partial(block_kernel, n=N, lout=Lout, cp=CP)
    flops = 2 * M * (Cin * 3) * (2 * CP) + 2 * M * (3 * CP) * CP
    bytes_accessed = (M * Cin * 3 * 2 + Cin * 3 * 2 * CP * 2        # bf16 matmul inputs
                      + 3 * CP * CP * 4 + 8 * CP * 4                # f32 weights / rows
                      + M * CP * 4)                                 # output
    out2d = pl.pallas_call(
        kernel,
        out_shape=jax.ShapeDtypeStruct((M, CP), jnp.float32),
        in_specs=[pl.BlockSpec(memory_space=pltpu.MemorySpace.VMEM)] * 9,
        out_specs=pl.BlockSpec(memory_space=pltpu.MemorySpace.VMEM),
        compiler_params=pltpu.CompilerParams(vmem_limit_bytes=32 * 1024 * 1024),
        cost_estimate=pl.CostEstimate(flops=int(flops), transcendentals=int(2 * CP),
                                      bytes_accessed=int(bytes_accessed)),
    )(xp1.astype(MATMUL_DTYPE), w_comb.astype(MATMUL_DTYPE), b_comb,
      row(g1), row(be1), w2_m, row(b2), row(g2), row(be2))

    # strip channel padding, back to PyTorch NCW layout
    return out2d[:, :Cout].reshape(N, Lout, Cout).transpose(0, 2, 1)


# ---------------- pure-JAX reference (for correctness check) ----------------
def _conv1d_ref(x, w, b, stride, pad):
    y = jax.lax.conv_general_dilated(
        x, w, window_strides=(stride,), padding=[(pad, pad)],
        dimension_numbers=('NCW', 'OIW', 'NCW'))
    return y + b[None, :, None]


def _bn_ref(x, g, be):
    mu = jnp.mean(x, axis=(0, 2), keepdims=True)
    var = jnp.mean((x - mu) ** 2, axis=(0, 2), keepdims=True)
    return (x - mu) * jax.lax.rsqrt(var + EPS) * g[None, :, None] + be[None, :, None]


def block_ref(x, params):
    wm, bm, w1, b1, g1, be1, w2, b2, g2, be2 = params
    ident = _conv1d_ref(x, wm, bm, 2, 0)
    h = jnp.maximum(_bn_ref(_conv1d_ref(x, w1, b1, 2, 1), g1, be1), 0.0)
    h = _bn_ref(_conv1d_ref(h, w2, b2, 1, 1), g2, be2)
    return jnp.maximum(h + ident, 0.0)


if __name__ == "__main__":
    N, Cin, Cout, L = 2, 4, 8, 16
    key = jax.random.PRNGKey(0)
    kx, k0, k1, k2, k3, k4, k5 = jax.random.split(key, 7)

    x = jax.random.normal(kx, (N, Cin, L), jnp.float32)

    # deterministic parameter init (shapes from the module __init__)
    wm = jax.random.normal(k0, (Cout, Cin, 1), jnp.float32) * 0.3   # mapping weight
    bm = jax.random.normal(k1, (Cout,), jnp.float32) * 0.1          # mapping bias
    w1 = jax.random.normal(k2, (Cout, Cin, 3), jnp.float32) * 0.3   # bblock1 conv
    b1 = jax.random.normal(k3, (Cout,), jnp.float32) * 0.1
    w2 = jax.random.normal(k4, (Cout, Cout, 3), jnp.float32) * 0.3  # bblock2 conv
    b2 = jax.random.normal(k5, (Cout,), jnp.float32) * 0.1
    # BatchNorm affine params at their PyTorch defaults (weight=1, bias=0)
    g1 = jnp.ones((Cout,), jnp.float32); be1 = jnp.zeros((Cout,), jnp.float32)
    g2 = jnp.ones((Cout,), jnp.float32); be2 = jnp.zeros((Cout,), jnp.float32)
    params = (wm, bm, w1, b1, g1, be1, w2, b2, g2, be2)

    out = jax.block_until_ready(block_forward(x, params))
    ref = jax.block_until_ready(block_ref(x, params))

    # Tolerance sized for bf16 MXU operands on the fused conv1/identity matmul
    # (propagated through two BatchNorms); any layout/tap/stat bug would give O(1) errors.
    tol = 1e-4 if MATMUL_DTYPE is jnp.float32 else 7e-2
    np.testing.assert_allclose(np.asarray(out), np.asarray(ref), rtol=tol, atol=tol)
    print("KERNEL_OK")
</pallas_src>

<mosaic_0001>
module attributes {stable_mosaic.version = 11 : i64} {
  func.func @block_kernel(%arg0: memref<16x12xbf16, #tpu.memory_space<vmem>>, %arg1: memref<12x256xbf16, #tpu.memory_space<vmem>>, %arg2: memref<1x256xf32, #tpu.memory_space<vmem>>, %arg3: memref<1x128xf32, #tpu.memory_space<vmem>>, %arg4: memref<1x128xf32, #tpu.memory_space<vmem>>, %arg5: memref<384x128xf32, #tpu.memory_space<vmem>>, %arg6: memref<1x128xf32, #tpu.memory_space<vmem>>, %arg7: memref<1x128xf32, #tpu.memory_space<vmem>>, %arg8: memref<1x128xf32, #tpu.memory_space<vmem>>, %arg9: memref<16x128xf32, #tpu.memory_space<vmem>>) attributes {dimension_semantics = [], scalar_prefetch = 0 : i64, scratch_operands = 0 : i64, tpu.core_type = #tpu.core_type<tc>} {
    %c0 = arith.constant 0 : index
    %c0_0 = arith.constant 0 : index
    %0 = vector.load %arg0[%c0, %c0_0] : memref<16x12xbf16, #tpu.memory_space<vmem>>, vector<16x12xbf16>
    %c0_1 = arith.constant 0 : index
    %c0_2 = arith.constant 0 : index
    %1 = vector.load %arg1[%c0_1, %c0_2] : memref<12x256xbf16, #tpu.memory_space<vmem>>, vector<12x256xbf16>
    %cst = arith.constant dense<0.000000e+00> : vector<16x256xf32>
    %2 = tpu.matmul %0, %1, %cst {dimension_numbers = #tpu.dot_dimension_numbers<[1], [0], [0], [1], [0, 0, 1, 1], [], []>} : vector<16x12xbf16>, vector<12x256xbf16>, vector<16x256xf32> -> vector<16x256xf32>
    %c0_3 = arith.constant 0 : index
    %c0_4 = arith.constant 0 : index
    %3 = vector.load %arg2[%c0_3, %c0_4] : memref<1x256xf32, #tpu.memory_space<vmem>>, vector<1x256xf32>
    %4 = vector.broadcast %3 : vector<1x256xf32> to vector<16x256xf32>
    %5 = arith.addf %2, %4 : vector<16x256xf32>
    %6 = vector.extract_strided_slice %5 {offsets = [0, 0], sizes = [16, 128], strides = [1, 1]} : vector<16x256xf32> to vector<16x128xf32>
    %7 = vector.extract_strided_slice %5 {offsets = [0, 128], sizes = [16, 128], strides = [1, 1]} : vector<16x256xf32> to vector<16x128xf32>
    %8 = arith.mulf %6, %6 : vector<16x128xf32>
    %9 = tpu.concatenate %6, %8 in 1 : vector<16x128xf32>, vector<16x128xf32> -> vector<16x256xf32>
    %cst_5 = arith.constant dense<0.000000e+00> : vector<256xf32>
    %10 = vector.multi_reduction <add>, %9, %cst_5 [0] : vector<16x256xf32> to vector<256xf32>
    %11 = vector.shape_cast %10 : vector<256xf32> to vector<1x256xf32>
    %12 = vector.extract_strided_slice %11 {offsets = [0, 0], sizes = [1, 128], strides = [1, 1]} : vector<1x256xf32> to vector<1x128xf32>
    %cst_6 = arith.constant 6.250000e-02 : f32
    %13 = vector.broadcast %cst_6 : f32 to vector<1x128xf32>
    %14 = arith.mulf %12, %13 : vector<1x128xf32>
    %15 = vector.extract_strided_slice %11 {offsets = [0, 128], sizes = [1, 128], strides = [1, 1]} : vector<1x256xf32> to vector<1x128xf32>
    %cst_7 = arith.constant 6.250000e-02 : f32
    %16 = vector.broadcast %cst_7 : f32 to vector<1x128xf32>
    %17 = arith.mulf %15, %16 : vector<1x128xf32>
    %18 = arith.mulf %14, %14 : vector<1x128xf32>
    %19 = arith.subf %17, %18 : vector<1x128xf32>
    %20 = vector.broadcast %14 : vector<1x128xf32> to vector<16x128xf32>
    %21 = arith.subf %6, %20 : vector<16x128xf32>
    %cst_8 = arith.constant 9.99999974E-6 : f32
    %22 = vector.broadcast %cst_8 : f32 to vector<1x128xf32>
    %23 = arith.addf %19, %22 : vector<1x128xf32>
    %24 = math.rsqrt %23 : vector<1x128xf32>
    %c0_9 = arith.constant 0 : index
    %c0_10 = arith.constant 0 : index
    %25 = vector.load %arg3[%c0_9, %c0_10] : memref<1x128xf32, #tpu.memory_space<vmem>>, vector<1x128xf32>
    %26 = arith.mulf %24, %25 : vector<1x128xf32>
    %27 = vector.broadcast %26 : vector<1x128xf32> to vector<16x128xf32>
    %28 = arith.mulf %21, %27 : vector<16x128xf32>
    %c0_11 = arith.constant 0 : index
    %c0_12 = arith.constant 0 : index
    %29 = vector.load %arg4[%c0_11, %c0_12] : memref<1x128xf32, #tpu.memory_space<vmem>>, vector<1x128xf32>
    %30 = vector.broadcast %29 : vector<1x128xf32> to vector<16x128xf32>
    %31 = arith.addf %28, %30 : vector<16x128xf32>
    %cst_13 = arith.constant 0.000000e+00 : f32
    %32 = vector.broadcast %cst_13 : f32 to vector<16x128xf32>
    %33 = arith.maximumf %31, %32 : vector<16x128xf32>
    %34 = vector.shape_cast %33 : vector<16x128xf32> to vector<2x8x128xf32>
    %cst_14 = arith.constant 0.000000e+00 : f32
    %35 = vector.broadcast %cst_14 : f32 to vector<2x1x128xf32>
    %36 = vector.extract_strided_slice %34 {offsets = [0, 0, 0], sizes = [2, 7, 128], strides = [1, 1, 1]} : vector<2x8x128xf32> to vector<2x7x128xf32>
    %37 = tpu.concatenate %35, %36 in 1 : vector<2x1x128xf32>, vector<2x7x128xf32> -> vector<2x8x128xf32>
    %38 = vector.extract_strided_slice %34 {offsets = [0, 1, 0], sizes = [2, 7, 128], strides = [1, 1, 1]} : vector<2x8x128xf32> to vector<2x7x128xf32>
    %39 = tpu.concatenate %38, %35 in 1 : vector<2x7x128xf32>, vector<2x1x128xf32> -> vector<2x8x128xf32>
    %40 = tpu.concatenate %37, %34, %39 in 2 : vector<2x8x128xf32>, vector<2x8x128xf32>, vector<2x8x128xf32> -> vector<2x8x384xf32>
    %41 = vector.shape_cast %40 : vector<2x8x384xf32> to vector<16x384xf32>
    %c0_15 = arith.constant 0 : index
    %c0_16 = arith.constant 0 : index
    %42 = vector.load %arg5[%c0_15, %c0_16] : memref<384x128xf32, #tpu.memory_space<vmem>>, vector<384x128xf32>
    %cst_17 = arith.constant dense<0.000000e+00> : vector<16x128xf32>
    %43 = tpu.matmul %41, %42, %cst_17 {dimension_numbers = #tpu.dot_dimension_numbers<[1], [0], [0], [1], [0, 0, 1, 1], [], []>} : vector<16x384xf32>, vector<384x128xf32>, vector<16x128xf32> -> vector<16x128xf32>
    %c0_18 = arith.constant 0 : index
    %c0_19 = arith.constant 0 : index
    %44 = vector.load %arg6[%c0_18, %c0_19] : memref<1x128xf32, #tpu.memory_space<vmem>>, vector<1x128xf32>
    %45 = vector.broadcast %44 : vector<1x128xf32> to vector<16x128xf32>
    %46 = arith.addf %43, %45 : vector<16x128xf32>
    %47 = arith.mulf %46, %46 : vector<16x128xf32>
    %48 = tpu.concatenate %46, %47 in 1 : vector<16x128xf32>, vector<16x128xf32> -> vector<16x256xf32>
    %cst_20 = arith.constant dense<0.000000e+00> : vector<256xf32>
    %49 = vector.multi_reduction <add>, %48, %cst_20 [0] : vector<16x256xf32> to vector<256xf32>
    %50 = vector.shape_cast %49 : vector<256xf32> to vector<1x256xf32>
    %51 = vector.extract_strided_slice %50 {offsets = [0, 0], sizes = [1, 128], strides = [1, 1]} : vector<1x256xf32> to vector<1x128xf32>
    %cst_21 = arith.constant 6.250000e-02 : f32
    %52 = vector.broadcast %cst_21 : f32 to vector<1x128xf32>
    %53 = arith.mulf %51, %52 : vector<1x128xf32>
    %54 = vector.extract_strided_slice %50 {offsets = [0, 128], sizes = [1, 128], strides = [1, 1]} : vector<1x256xf32> to vector<1x128xf32>
    %cst_22 = arith.constant 6.250000e-02 : f32
    %55 = vector.broadcast %cst_22 : f32 to vector<1x128xf32>
    %56 = arith.mulf %54, %55 : vector<1x128xf32>
    %57 = arith.mulf %53, %53 : vector<1x128xf32>
    %58 = arith.subf %56, %57 : vector<1x128xf32>
    %59 = vector.broadcast %53 : vector<1x128xf32> to vector<16x128xf32>
    %60 = arith.subf %46, %59 : vector<16x128xf32>
    %cst_23 = arith.constant 9.99999974E-6 : f32
    %61 = vector.broadcast %cst_23 : f32 to vector<1x128xf32>
    %62 = arith.addf %58, %61 : vector<1x128xf32>
    %63 = math.rsqrt %62 : vector<1x128xf32>
    %c0_24 = arith.constant 0 : index
    %c0_25 = arith.constant 0 : index
    %64 = vector.load %arg7[%c0_24, %c0_25] : memref<1x128xf32, #tpu.memory_space<vmem>>, vector<1x128xf32>
    %65 = arith.mulf %63, %64 : vector<1x128xf32>
    %66 = vector.broadcast %65 : vector<1x128xf32> to vector<16x128xf32>
    %67 = arith.mulf %60, %66 : vector<16x128xf32>
    %c0_26 = arith.constant 0 : index
    %c0_27 = arith.constant 0 : index
    %68 = vector.load %arg8[%c0_26, %c0_27] : memref<1x128xf32, #tpu.memory_space<vmem>>, vector<1x128xf32>
    %69 = vector.broadcast %68 : vector<1x128xf32> to vector<16x128xf32>
    %70 = arith.addf %67, %69 : vector<16x128xf32>
    %71 = arith.addf %70, %7 : vector<16x128xf32>
    %cst_28 = arith.constant 0.000000e+00 : f32
    %72 = vector.broadcast %cst_28 : f32 to vector<16x128xf32>
    %73 = arith.maximumf %71, %72 : vector<16x128xf32>
    %c0_29 = arith.constant 0 : index
    %c0_30 = arith.constant 0 : index
    %74 = vector.load %arg9[%c0_29, %c0_30] : memref<16x128xf32, #tpu.memory_space<vmem>>, vector<16x128xf32>
    tpu.vector_store %arg9[%c0_29, %c0_30], %73 {strides = array<i32>} : memref<16x128xf32, #tpu.memory_space<vmem>>, vector<16x128xf32>,
    return
  }
}

</mosaic_0001>

<llo_original>
// kernel: block_forward.1
$region0: #{block_forward.1}
  #allocation0 [shape = 'u32[]', space=smem, size = 0x4, offset = 0x4, fixed_abs, tag = 'smem constant byte address 0x4 - core index']
  #allocation1 [shape = 'u32[144,128]{1,0:T(1,128)}', space=vmem, size = 0x12000, scoped, tag = 'internal scratch']
  %s0 = inlined_call_operand.vmem [shape: bf16[16,12], index: 0, kind: input, shape index: {}]
  %s1 = inlined_call_operand.vmem [shape: bf16[12,256], index: 1, kind: input, shape index: {}]
  %s2 = inlined_call_operand.vmem [shape: f32[1,256], index: 2, kind: input, shape index: {}]
  %s3 = inlined_call_operand.vmem [shape: f32[1,128], index: 3, kind: input, shape index: {}]
  %s4 = inlined_call_operand.vmem [shape: f32[1,128], index: 4, kind: input, shape index: {}]
  %s5 = inlined_call_operand.vmem [shape: f32[384,128], index: 5, kind: input, shape index: {}]
  %s6 = inlined_call_operand.vmem [shape: f32[1,128], index: 6, kind: input, shape index: {}]
  %s7 = inlined_call_operand.vmem [shape: f32[1,128], index: 7, kind: input, shape index: {}]
  %s8 = inlined_call_operand.vmem [shape: f32[1,128], index: 8, kind: input, shape index: {}]
  %s9 = inlined_call_operand.vmem [shape: f32[16,128], index: 9, kind: output, shape index: {}]
  %s10 = sld [smem:[#allocation0]]
  $region46: #{block_forward.1} parent=0
    _
  %s12 = ssub.s32 1, %s10
  %s13 = scalar_select 0, %s12, %s10
  // Predicated region
  $region2: #{block_forward.1} parent=0 // pred_check
    _
  $region3: #{block_forward.1} parent=0 // pred_check_branch
    %15 = sbr.rel (0) target = $region5
  $region4: #{block_forward.1} parent=0 // pred_region
    _
  $region5: #{block_forward.1} parent=0 // pred_fallthru
    _
  // Predicated region
  $region6: #{block_forward.1} parent=0 // pred_check
    _
  $region7: #{block_forward.1} parent=0 // pred_check_branch
    %17 = sbr.rel (0) target = $region9
  $region8: #{block_forward.1} parent=0 // pred_region
    _
  $region9: #{block_forward.1} parent=0 // pred_fallthru
    _
  // Predicated region
  $region10: #{block_forward.1} parent=0 // pred_check
    _
  $region11: #{block_forward.1} parent=0 // pred_check_branch
    %19 = sbr.rel (0) target = $region13
  $region12: #{block_forward.1} parent=0 // pred_region
    _
  $region13: #{block_forward.1} parent=0 // pred_fallthru
    _
  // Predicated region
  $region14: #{block_forward.1} parent=0 // pred_check
    _
  $region15: #{block_forward.1} parent=0 // pred_check_branch
    %21 = sbr.rel (0) target = $region17
  $region16: #{block_forward.1} parent=0 // pred_region
    _
  $region17: #{block_forward.1} parent=0 // pred_fallthru
    _
  // Predicated region
  $region18: #{block_forward.1} parent=0 // pred_check
    _
  $region19: #{block_forward.1} parent=0 // pred_check_branch
    %23 = sbr.rel (0) target = $region21
  $region20: #{block_forward.1} parent=0 // pred_region
    _
  $region21: #{block_forward.1} parent=0 // pred_fallthru
    _
  // Predicated region
  $region22: #{block_forward.1} parent=0 // pred_check
    _
  $region23: #{block_forward.1} parent=0 // pred_check_branch
    %25 = sbr.rel (0) target = $region25
  $region24: #{block_forward.1} parent=0 // pred_region
    _
  $region25: #{block_forward.1} parent=0 // pred_fallthru
    _
  // Predicated region
  $region26: #{block_forward.1} parent=0 // pred_check
    _
  $region27: #{block_forward.1} parent=0 // pred_check_branch
    %27 = sbr.rel (0) target = $region29
  $region28: #{block_forward.1} parent=0 // pred_region
    _
  $region29: #{block_forward.1} parent=0 // pred_fallthru
    _
  // Predicated region
  $region30: #{block_forward.1} parent=0 // pred_check
    _
  $region31: #{block_forward.1} parent=0 // pred_check_branch
    %29 = sbr.rel (0) target = $region33
  $region32: #{block_forward.1} parent=0 // pred_region
    _
  $region33: #{block_forward.1} parent=0 // pred_fallthru
    _
  // Predicated region
  $region34: #{block_forward.1} parent=0 // pred_check
    _
  $region35: #{block_forward.1} parent=0 // pred_check_branch
    %31 = sbr.rel (0) target = $region37
  $region36: #{block_forward.1} parent=0 // pred_region
    _
  $region37: #{block_forward.1} parent=0 // pred_fallthru
    _
  %v33 = vld [vmem:[%s0] sm:$0xf]
  %v34 = vld [vmem:[%s0 + $0x4] sm:$0xf]
  %v35 = vld [vmem:[%s1] sm:$0xff]
  %v36 = vld [vmem:[%s1 + $0x8] sm:$0x33]
  %v37 = vld [vmem:[%s2] sm:$0x3]
  %v39 = vlaneseq
  %v40 = vshrl.u32 %v39, 7
  %v41 = vsub.s32 0, %v40
  %v42 = vrot.slane %v37, %v41
  %v43 = vlaneseq
  %v44 = vshrl.u32 %v43, 7
  %v45 = vsub.s32 1, %v44
  %v46 = vrot.slane %v37, %v45
  %v51 = vunpack.c.l.b16 %v33
  %v52 = vunpack.c.l.b16 %v34
  %v53 = vpack.c.b16 %v52, %v51
  %v56 = vunpack.c.l.b16 %v35
  %v57 = vunpack.c.h.b16 %v35
  %v58 = vunpack.c.l.b16 %v36
  %v59 = vunpack.c.h.b16 %v36
  %v60 = vpack.c.b16 %v58, %v56
  %v61 = vpack.c.b16 %v59, %v57
  %vm62 = vcmask 97280
  %v64 = vsel %vm62, %v53, 0
  %vm66 = vcmask 1045504
  %v68 = vsel %vm66, %v60, 0
  %v71 = vsel %vm66, %v61, 0
  %73 = vmatprep.subr.bf16.mxu0 0
  %74 = vmatpush1.bf16.msra.mxu0 0
  %75 = vmatprep.subr.bf16.mxu0 0
  %76 = vmatpush1.bf16.msra.mxu0 0
  %77 = vmatprep.subr.bf16.mxu0 0
  %78 = vmatpush1.bf16.msra.mxu0 0
  %79 = vmatprep.subr.bf16.mxu0 0
  %80 = vmatpush1.bf16.msra.mxu0 0
  %81 = vmatprep.subr.bf16.mxu0 0
  %82 = vmatpush1.bf16.msra.mxu0 0
  %83 = vmatprep.subr.bf16.mxu0 0
  %84 = vmatpush1.bf16.msra.mxu0 0
  %85 = vmatprep.subr.bf16.mxu0 0
  %86 = vmatpush1.bf16.msra.mxu0 0
  %87 = vmatprep.subr.bf16.mxu0 %v71
  %88 = vmatpush1.bf16.msra.mxu0 %v68
  %89 = vmatprep.subr.bf16.mxu0 0
  %90 = vmatpush2.bf16.msra.mxu0 0
  %91 = vmatprep.subr.bf16.mxu0 0
  %92 = vmatpush2.bf16.msra.mxu0 0
  %93 = vmatprep.subr.bf16.mxu0 0
  %94 = vmatpush2.bf16.msra.mxu0 0
  %95 = vmatprep.subr.bf16.mxu0 0
  %96 = vmatpush2.bf16.msra.mxu0 0
  %97 = vmatprep.subr.bf16.mxu0 0
  %98 = vmatpush2.bf16.msra.mxu0 0
  %99 = vmatprep.subr.bf16.mxu0 0
  %100 = vmatpush2.bf16.msra.mxu0 0
  %101 = vmatprep.subr.bf16.mxu0 0
  %102 = vmatpush2.bf16.msra.mxu0 0
  %103 = vmatprep.subr.bf16.mxu0 0
  %104 = vmatpush2.bf16.msra.mxu0 0
  %105 = vmatprep.mubr.bf16.mxu0 0
  %106 = vmatmul.mubr.bf16.gmra.mxu0 %v64
  %v107 = vpop.f32.mrf.mxu0
  %v108 = vadd.f32 %v42, %v107
  %v109 = vpop.f32.mrf.mxu0
  %v110 = vadd.f32 %v46, %v109
  %v111 = vpop.f32.mrf.mxu0
  %v112 = vadd.f32 %v42, %v111
  %v113 = vpop.f32.mrf.mxu0
  %v114 = vadd.f32 %v46, %v113
  %115 = vdwg.mxu0
  %v116 = vmul.f32 %v108, %v108
  %v117 = vmul.f32 %v112, %v112
  %v118 = vadd.f32 %v108, %v112
  %v119 = vrot.slane %v118, 4
  %v120 = vadd.f32 %v118, %v119
  %v121 = vrot.slane %v120, 2
  %v122 = vadd.f32 %v120, %v121
  %v123 = vrot.slane %v122, 1
  %v124 = vadd.f32 %v122, %v123
  %v125 = vadd.f32 %v116, %v117
  %v126 = vrot.slane %v125, 4
  %v127 = vadd.f32 %v125, %v126
  %v128 = vrot.slane %v127, 2
  %v129 = vadd.f32 %v127, %v128
  %v130 = vrot.slane %v129, 1
  %v131 = vadd.f32 %v129, %v130
  %v132 = vmul.f32 %v124, 0.0625
  %v133 = vmul.f32 %v131, 0.0625
  %v134 = vmul.f32 %v132, %v132
  %v135 = vsub.f32 %v133, %v134
  %v136 = vsub.f32 %v108, %v132
  %v137 = vsub.f32 %v112, %v132
  %v138 = vadd.f32 %v135, 1e-05
  %v139 = vrsqrt.pop %v138
  %v140 = vld [vmem:[%s3] sm:$0x1]
  %v141 = vmul.f32 %v139, %v140
  %v142 = vlaneseq
  %v143 = vshrl.u32 %v142, 7
  %v144 = vsub.s32 0, %v143
  %v145 = vrot.slane %v141, %v144
  %v146 = vmul.f32 %v136, %v145
  %v147 = vmul.f32 %v137, %v145
  %v148 = vld [vmem:[%s4] sm:$0x1]
  %v150 = vlaneseq
  %v151 = vshrl.u32 %v150, 7
  %v152 = vsub.s32 0, %v151
  %v153 = vrot.slane %v148, %v152
  %v155 = vadd.f32 %v146, %v153
  %v156 = vadd.f32 %v147, %v153
  %v157 = vmax.f32 %v155, 0.0
  %v158 = vmax.f32 %v156, 0.0
  %v161 = vrot.slane %v157, 7
  %v162 = vrot.slane %v158, 7
  %vm165 = vcmask 1040384
  %v166 = vsel %vm165, 0.0, %v161
  %v167 = vsel %vm165, 0.0, %v162
  %v168 = vrot.slane %v157, 1
  %v169 = vrot.slane %v158, 1
  %vm172 = vcmask 1046528
  %v173 = vsel %vm172, %v168, 0.0
  %v174 = vsel %vm172, %v169, 0.0
  %v175 = vld [vmem:[%s5] sm:$0xff]
  %v176 = vld [vmem:[%s5 + $0x8] sm:$0xff]
  %v177 = vld [vmem:[%s5 + $0x10] sm:$0xff]
  %v178 = vld [vmem:[%s5 + $0x18] sm:$0xff]
  %v179 = vld [vmem:[%s5 + $0x20] sm:$0xff]
  %v180 = vld [vmem:[%s5 + $0x28] sm:$0xff]
  %v181 = vld [vmem:[%s5 + $0x30] sm:$0xff]
  %v182 = vld [vmem:[%s5 + $0x38] sm:$0xff]
  %v183 = vld [vmem:[%s5 + $0x40] sm:$0xff]
  %v184 = vld [vmem:[%s5 + $0x48] sm:$0xff]
  %v185 = vld [vmem:[%s5 + $0x50] sm:$0xff]
  %v186 = vld [vmem:[%s5 + $0x58] sm:$0xff]
  %v187 = vld [vmem:[%s5 + $0x60] sm:$0xff]
  %v188 = vld [vmem:[%s5 + $0x68] sm:$0xff]
  %v189 = vld [vmem:[%s5 + $0x70] sm:$0xff]
  %v190 = vld [vmem:[%s5 + $0x78] sm:$0xff]
  %v191 = vld [vmem:[%s5 + $0x80] sm:$0xff]
  %v192 = vld [vmem:[%s5 + $0x88] sm:$0xff]
  %v193 = vld [vmem:[%s5 + $0x90] sm:$0xff]
  %v194 = vld [vmem:[%s5 + $0x98] sm:$0xff]
  %v195 = vld [vmem:[%s5 + $0xa0] sm:$0xff]
  %v196 = vld [vmem:[%s5 + $0xa8] sm:$0xff]
  %v197 = vld [vmem:[%s5 + $0xb0] sm:$0xff]
  %v198 = vld [vmem:[%s5 + $0xb8] sm:$0xff]
  %v199 = vld [vmem:[%s5 + $0xc0] sm:$0xff]
  %v200 = vld [vmem:[%s5 + $0xc8] sm:$0xff]
  %v201 = vld [vmem:[%s5 + $0xd0] sm:$0xff]
  %v202 = vld [vmem:[%s5 + $0xd8] sm:$0xff]
  %v203 = vld [vmem:[%s5 + $0xe0] sm:$0xff]
  %v204 = vld [vmem:[%s5 + $0xe8] sm:$0xff]
  %v205 = vld [vmem:[%s5 + $0xf0] sm:$0xff]
  %v206 = vld [vmem:[%s5 + $0xf8] sm:$0xff]
  %v207 = vld [vmem:[%s5 + $0x100] sm:$0xff]
  %v208 = vld [vmem:[%s5 + $0x108] sm:$0xff]
  %v209 = vld [vmem:[%s5 + $0x110] sm:$0xff]
  %v210 = vld [vmem:[%s5 + $0x118] sm:$0xff]
  %v211 = vld [vmem:[%s5 + $0x120] sm:$0xff]
  %v212 = vld [vmem:[%s5 + $0x128] sm:$0xff]
  %v213 = vld [vmem:[%s5 + $0x130] sm:$0xff]
  %v214 = vld [vmem:[%s5 + $0x138] sm:$0xff]
  %v215 = vld [vmem:[%s5 + $0x140] sm:$0xff]
  %v216 = vld [vmem:[%s5 + $0x148] sm:$0xff]
  %v217 = vld [vmem:[%s5 + $0x150] sm:$0xff]
  %v218 = vld [vmem:[%s5 + $0x158] sm:$0xff]
  %v219 = vld [vmem:[%s5 + $0x160] sm:$0xff]
  %v220 = vld [vmem:[%s5 + $0x168] sm:$0xff]
  %v221 = vld [vmem:[%s5 + $0x170] sm:$0xff]
  %v222 = vld [vmem:[%s5 + $0x178] sm:$0xff]
  %v223 = vld [vmem:[%s6] sm:$0x1]
  %v225 = vlaneseq
  %v226 = vshrl.u32 %v225, 7
  %v227 = vsub.s32 0, %v226
  %v228 = vrot.slane %v223, %v227
  %230 = vmatprep.subr.mxu0 0.0
  %231 = vmatpush1.msra.mxu0 %v190
  %232 = vmatprep.subr.mxu0 0.0
  %233 = vmatpush1.msra.mxu0 %v189
  %234 = vmatprep.subr.mxu0 0.0
  %235 = vmatpush1.msra.mxu0 %v188
  %236 = vmatprep.subr.mxu0 0.0
  %237 = vmatpush1.msra.mxu0 %v187
  %238 = vmatprep.subr.mxu0 0.0
  %239 = vmatpush1.msra.mxu0 %v186
  %240 = vmatprep.subr.mxu0 0.0
  %241 = vmatpush1.msra.mxu0 %v185
  %242 = vmatprep.subr.mxu0 0.0
  %243 = vmatpush1.msra.mxu0 %v184
  %244 = vmatprep.subr.mxu0 0.0
  %245 = vmatpush1.msra.mxu0 %v183
  %246 = vmatprep.subr.mxu0 0.0
  %247 = vmatpush1.msra.mxu0 %v182
  %248 = vmatprep.subr.mxu0 0.0
  %249 = vmatpush1.msra.mxu0 %v181
  %250 = vmatprep.subr.mxu0 0.0
  %251 = vmatpush1.msra.mxu0 %v180
  %252 = vmatprep.subr.mxu0 0.0
  %253 = vmatpush1.msra.mxu0 %v179
  %254 = vmatprep.subr.mxu0 0.0
  %255 = vmatpush1.msra.mxu0 %v178
  %256 = vmatprep.subr.mxu0 0.0
  %257 = vmatpush1.msra.mxu0 %v177
  %258 = vmatprep.subr.mxu0 0.0
  %259 = vmatpush1.msra.mxu0 %v176
  %260 = vmatprep.subr.mxu0 0.0
  %261 = vmatpush1.msra.mxu0 %v175
  %262 = vmatprep.subr.mxu0 0.0
  %263 = vmatpush2.msra.mxu0 %v206
  %264 = vmatprep.subr.mxu0 0.0
  %265 = vmatpush2.msra.mxu0 %v205
  %266 = vmatprep.subr.mxu0 0.0
  %267 = vmatpush2.msra.mxu0 %v204
  %268 = vmatprep.subr.mxu0 0.0
  %269 = vmatpush2.msra.mxu0 %v203
  %270 = vmatprep.subr.mxu0 0.0
  %271 = vmatpush2.msra.mxu0 %v202
  %272 = vmatprep.subr.mxu0 0.0
  %273 = vmatpush2.msra.mxu0 %v201
  %274 = vmatprep.subr.mxu0 0.0
  %275 = vmatpush2.msra.mxu0 %v200
  %276 = vmatprep.subr.mxu0 0.0
  %277 = vmatpush2.msra.mxu0 %v199
  %278 = vmatprep.subr.mxu0 0.0
  %279 = vmatpush2.msra.mxu0 %v198
  %280 = vmatprep.subr.mxu0 0.0
  %281 = vmatpush2.msra.mxu0 %v197
  %282 = vmatprep.subr.mxu0 0.0
  %283 = vmatpush2.msra.mxu0 %v196
  %284 = vmatprep.subr.mxu0 0.0
  %285 = vmatpush2.msra.mxu0 %v195
  %286 = vmatprep.subr.mxu0 0.0
  %287 = vmatpush2.msra.mxu0 %v194
  %288 = vmatprep.subr.mxu0 0.0
  %289 = vmatpush2.msra.mxu0 %v193
  %290 = vmatprep.subr.mxu0 0.0
  %291 = vmatpush2.msra.mxu0 %v192
  %292 = vmatprep.subr.mxu0 0.0
  %293 = vmatpush2.msra.mxu0 %v191
  %294 = vmatprep.mubr.f32.mxu0 %v157
  %295 = vmatmul.mubr.f32.gmra.mxu0 %v166
  %v296 = vpop.f32.mrf.mxu0
  %v297 = vadd.f32 %v228, %v296
  %v298 = vpop.f32.mrf.mxu0
  %299 = vmatprep.mubr.f32.mxu0 %v158
  %300 = vmatmul.mubr.f32.gmra.mxu0 %v167
  %v301 = vpop.f32.mrf.mxu0
  %v302 = vadd.f32 %v228, %v301
  %v303 = vpop.f32.mrf.mxu0
  %304 = vdwg.mxu0
  %305 = vmatprep.subr.mxu0 0.0
  %306 = vmatpush1.msra.mxu0 %v222
  %307 = vmatprep.subr.mxu0 0.0
  %308 = vmatpush1.msra.mxu0 %v221
  %309 = vmatprep.subr.mxu0 0.0
  %310 = vmatpush1.msra.mxu0 %v220
  %311 = vmatprep.subr.mxu0 0.0
  %312 = vmatpush1.msra.mxu0 %v219
  %313 = vmatprep.subr.mxu0 0.0
  %314 = vmatpush1.msra.mxu0 %v218
  %315 = vmatprep.subr.mxu0 0.0
  %316 = vmatpush1.msra.mxu0 %v217
  %317 = vmatprep.subr.mxu0 0.0
  %318 = vmatpush1.msra.mxu0 %v216
  %319 = vmatprep.subr.mxu0 0.0
  %320 = vmatpush1.msra.mxu0 %v215
  %321 = vmatprep.subr.mxu0 0.0
  %322 = vmatpush1.msra.mxu0 %v214
  %323 = vmatprep.subr.mxu0 0.0
  %324 = vmatpush1.msra.mxu0 %v213
  %325 = vmatprep.subr.mxu0 0.0
  %326 = vmatpush1.msra.mxu0 %v212
  %327 = vmatprep.subr.mxu0 0.0
  %328 = vmatpush1.msra.mxu0 %v211
  %329 = vmatprep.subr.mxu0 0.0
  %330 = vmatpush1.msra.mxu0 %v210
  %331 = vmatprep.subr.mxu0 0.0
  %332 = vmatpush1.msra.mxu0 %v209
  %333 = vmatprep.subr.mxu0 0.0
  %334 = vmatpush1.msra.mxu0 %v208
  %335 = vmatprep.subr.mxu0 0.0
  %336 = vmatpush1.msra.mxu0 %v207
  %337 = vmatprep.subr.mxu0 0.0
  %338 = vmatpush2.msra.mxu0 0.0
  %339 = vmatprep.subr.mxu0 0.0
  %340 = vmatpush2.msra.mxu0 0.0
  %341 = vmatprep.subr.mxu0 0.0
  %342 = vmatpush2.msra.mxu0 0.0
  %343 = vmatprep.subr.mxu0 0.0
  %344 = vmatpush2.msra.mxu0 0.0
  %345 = vmatprep.subr.mxu0 0.0
  %346 = vmatpush2.msra.mxu0 0.0
  %347 = vmatprep.subr.mxu0 0.0
  %348 = vmatpush2.msra.mxu0 0.0
  %349 = vmatprep.subr.mxu0 0.0
  %350 = vmatpush2.msra.mxu0 0.0
  %351 = vmatprep.subr.mxu0 0.0
  %352 = vmatpush2.msra.mxu0 0.0
  %353 = vmatprep.subr.mxu0 0.0
  %354 = vmatpush2.msra.mxu0 0.0
  %355 = vmatprep.subr.mxu0 0.0
  %356 = vmatpush2.msra.mxu0 0.0
  %357 = vmatprep.subr.mxu0 0.0
  %358 = vmatpush2.msra.mxu0 0.0
  %359 = vmatprep.subr.mxu0 0.0
  %360 = vmatpush2.msra.mxu0 0.0
  %361 = vmatprep.subr.mxu0 0.0
  %362 = vmatpush2.msra.mxu0 0.0
  %363 = vmatprep.subr.mxu0 0.0
  %364 = vmatpush2.msra.mxu0 0.0
  %365 = vmatprep.subr.mxu0 0.0
  %366 = vmatpush2.msra.mxu0 0.0
  %367 = vmatprep.subr.mxu0 0.0
  %368 = vmatpush2.msra.mxu0 0.0
  %369 = vmatprep.mubr.f32.mxu0 0.0
  %370 = vmatmul.mubr.f32.gmra.mxu0 %v173
  %v371 = vpop.f32.mrf.mxu0
  %v372 = vadd.f32 %v297, %v371
  %v373 = vpop.f32.mrf.mxu0
  %374 = vmatprep.mubr.f32.mxu0 0.0
  %375 = vmatmul.mubr.f32.gmra.mxu0 %v174
  %v376 = vpop.f32.mrf.mxu0
  %v377 = vadd.f32 %v302, %v376
  %v378 = vpop.f32.mrf.mxu0
  %379 = vdwg.mxu0
  %v380 = vmul.f32 %v372, %v372
  %v381 = vmul.f32 %v377, %v377
  %v382 = vadd.f32 %v372, %v377
  %v383 = vrot.slane %v382, 4
  %v384 = vadd.f32 %v382, %v383
  %v385 = vrot.slane %v384, 2
  %v386 = vadd.f32 %v384, %v385
  %v387 = vrot.slane %v386, 1
  %v388 = vadd.f32 %v386, %v387
  %v389 = vadd.f32 %v380, %v381
  %v390 = vrot.slane %v389, 4
  %v391 = vadd.f32 %v389, %v390
  %v392 = vrot.slane %v391, 2
  %v393 = vadd.f32 %v391, %v392
  %v394 = vrot.slane %v393, 1
  %v395 = vadd.f32 %v393, %v394
  %v396 = vmul.f32 %v388, 0.0625
  %v397 = vmul.f32 %v395, 0.0625
  %v398 = vmul.f32 %v396, %v396
  %v399 = vsub.f32 %v397, %v398
  %v400 = vsub.f32 %v372, %v396
  %v401 = vsub.f32 %v377, %v396
  %v402 = vadd.f32 %v399, 1e-05
  %v403 = vrsqrt.pop %v402
  %v404 = vld [vmem:[%s7] sm:$0x1]
  %v405 = vmul.f32 %v403, %v404
  %v406 = vlaneseq
  %v407 = vshrl.u32 %v406, 7
  %v408 = vsub.s32 0, %v407
  %v409 = vrot.slane %v405, %v408
  %v410 = vmul.f32 %v400, %v409
  %v411 = vmul.f32 %v401, %v409
  %v412 = vld [vmem:[%s8] sm:$0x1]
  %v414 = vlaneseq
  %v415 = vshrl.u32 %v414, 7
  %v416 = vsub.s32 0, %v415
  %v417 = vrot.slane %v412, %v416
  %v419 = vadd.f32 %v410, %v417
  %v420 = vadd.f32 %v411, %v417
  %v421 = vadd.f32 %v419, %v110
  %v422 = vadd.f32 %v420, %v114
  %v423 = vmax.f32 %v421, 0.0
  %v424 = vmax.f32 %v422, 0.0
  %425 = vst [vmem:[%s9] sm:$0xff] %v423
  %426 = vst [vmem:[%s9 + $0x8] sm:$0xff] %v424
  // Predicated region
  $region38: #{block_forward.1} parent=0 // pred_check
    _
  $region39: #{block_forward.1} parent=0 // pred_check_branch
    %428 = sbr.rel (0) target = $region41
  $region40: #{block_forward.1} parent=0 // pred_region
    _
  $region41: #{block_forward.1} parent=0 // pred_fallthru
    _
  // Predicated region
  $region42: #{block_forward.1} parent=0 // pred_check
    _
  $region43: #{block_forward.1} parent=0 // pred_check_branch
    %430 = sbr.rel (0) target = $region45
  $region44: #{block_forward.1} parent=0 // pred_region
    _
  $region45: #{block_forward.1} parent=0 // pred_fallthru
    _

</llo_original>
